<compile_context>
chip_gen: v7x
topology: tpu7x:2x2x1
jax: 0.10.0
libtpu: 0.0.40
codegen_flags: <defaults>
</compile_context>

<pallas_src>
import jax
import jax.numpy as jnp
from jax.experimental import pallas as pl
from jax.experimental.pallas import tpu as pltpu


def _round_up(x, m):
    return ((x + m - 1) // m) * m


def _nll_loss_kernel(pred_ref, tgt_ref, out_ref, acc_ref):
    # pred_ref: (tm, C) log-probs tile (native dtype) in VMEM
    # tgt_ref:  (tm, 1) int32 class indices tile in VMEM (padded rows hold -1)
    # out_ref:  (1, 1, 1) f32 per-core partial sum of picked log-probs
    # acc_ref:  (1, C) f32 running per-class partial sums (VMEM scratch)
    i = pl.program_id(1)

    @pl.when(i == 0)
    def _init():
        acc_ref[...] = jnp.zeros_like(acc_ref)

    pred = pred_ref[...].astype(jnp.float32)        # cast per tile, not in wrapper
    tgt = tgt_ref[...]                              # (tm, 1) int32
    tm, c = pred.shape

    col = jax.lax.broadcasted_iota(jnp.int32, (tm, c), 1)   # class ids
    picked = jnp.where(col == tgt, pred, 0.0)       # padded rows (tgt=-1) select nothing
    # Axis-0 partial sums only (VPU adds); lane reduce deferred to finalize.
    acc_ref[...] += jnp.sum(picked, axis=0, keepdims=True)

    @pl.when(i == pl.num_programs(1) - 1)
    def _finalize():
        out_ref[...] = jnp.sum(acc_ref[...]).reshape(1, 1, 1)


def _choose_block_rows(n, c, pred_itemsize, vmem_budget_bytes):
    c_pad = _round_up(c, 128)
    # Double-buffered VMEM bytes per row: lane-padded pred row + the (tm,1) int32
    # target row, which lane-pads to 128 words (explicitly budgeted).
    per_row = c_pad * pred_itemsize + 128 * 4
    tm = vmem_budget_bytes // (2 * per_row)
    tm = max(8, min(8192, (tm // 8) * 8))
    tm = min(tm, _round_up(n, 8))
    return tm


def nll_loss_pallas(pred, target, trans_feat=None, *, block_rows=None,
                    vmem_budget_bytes=16 * 1024 * 1024):
    """F.nll_loss(pred, target) with reduction='mean'. trans_feat is ignored."""
    del trans_feat  # unused by the reference module's forward
    n, c = pred.shape

    if block_rows is None:
        tm = _choose_block_rows(n, c, pred.dtype.itemsize, vmem_budget_bytes)
    else:
        tm = min(_round_up(block_rows, 8), _round_up(n, 8))

    nblocks = (n + tm - 1) // tm
    cores = 2 if nblocks >= 2 else 1      # v7x: split batch blocks across both TCs
    bpc = (nblocks + cores - 1) // cores  # blocks per core

    # Pad target with an out-of-range class (-1) so padded / OOB rows never match.
    padded_rows = cores * bpc * tm
    target_padded = jnp.pad(target.astype(jnp.int32), (0, padded_rows - n),
                            constant_values=-1).reshape(padded_rows, 1)

    def pred_index(ci, i):
        g = ci * bpc + i
        if cores * bpc > nblocks:
            # Duplicate tail block: clamp pred read; its target block is all -1,
            # so the duplicated data contributes exactly 0.
            g = jnp.minimum(g, nblocks - 1)
        return (g, 0)

    def tgt_index(ci, i):
        return (ci * bpc + i, 0)

    partials = pl.pallas_call(
        _nll_loss_kernel,
        out_shape=jax.ShapeDtypeStruct((cores, 1, 1), jnp.float32),
        grid_spec=pltpu.PrefetchScalarGridSpec(
            num_scalar_prefetch=0,
            grid=(cores, bpc),
            in_specs=[
                pl.BlockSpec((tm, c), pred_index),
                pl.BlockSpec((tm, 1), tgt_index),
            ],
            out_specs=pl.BlockSpec((1, 1, 1), lambda ci, i: (ci, 0, 0)),
            scratch_shapes=[pltpu.VMEM((1, c), jnp.float32)],
        ),
        compiler_params=pltpu.CompilerParams(
            dimension_semantics=("parallel", "arbitrary"),
            vmem_limit_bytes=32 * 1024 * 1024,
        ),
    )(pred, target_padded)

    # reduction='mean': negate and divide by the true batch size.
    return -jnp.sum(partials) / jnp.float32(n)


if __name__ == "__main__":
    key = jax.random.PRNGKey(0)
    k1, k2, k3, k4 = jax.random.split(key, 4)

    # Case 1: small batch -> single-block, single-core path (typical module usage).
    N1, C1 = 8, 16
    logits1 = jax.random.normal(k1, (N1, C1), dtype=jnp.float32)
    pred1 = jax.nn.log_softmax(logits1, axis=-1)                 # log-probabilities
    target1 = jax.random.randint(k2, (N1,), 0, C1, dtype=jnp.int32)
    trans_feat = jax.random.normal(k1, (N1, 3, 3), dtype=jnp.float32)  # unused

    loss1 = jax.block_until_ready(nll_loss_pallas(pred1, target1, trans_feat))
    ref1 = -jnp.mean(pred1[jnp.arange(N1), target1])
    assert jnp.allclose(loss1, ref1, atol=1e-5, rtol=1e-5), (loss1, ref1)

    # Case 2: exercise the tiled, 2-core-split path with a partial last tile and a
    # clamped duplicate tail block (nblocks=3 -> grid (2,2)).
    N2, C2 = 20, 16
    logits2 = jax.random.normal(k3, (N2, C2), dtype=jnp.float32)
    pred2 = jax.nn.log_softmax(logits2, axis=-1)
    target2 = jax.random.randint(k4, (N2,), 0, C2, dtype=jnp.int32)

    loss2 = jax.block_until_ready(
        nll_loss_pallas(pred2, target2, None, block_rows=8))
    ref2 = -jnp.mean(pred2[jnp.arange(N2), target2])
    assert jnp.allclose(loss2, ref2, atol=1e-5, rtol=1e-5), (loss2, ref2)

    print("KERNEL_OK")
</pallas_src>

<mosaic_0001>
module attributes {stable_mosaic.version = 11 : i64} {
  func.func @_nll_loss_kernel(%arg0: i32, %arg1: i32, %arg2: memref<8x16xf32, #tpu.memory_space<vmem>>, %arg3: memref<8x1xi32, #tpu.memory_space<vmem>>, %arg4: memref<1x1x1xf32, #tpu.memory_space<vmem>>, %arg5: memref<1x16xf32, #tpu.memory_space<vmem>>) attributes {dimension_semantics = [#tpu.dimension_semantics<parallel>, #tpu.dimension_semantics<arbitrary>], iteration_bounds = array<i64: 1, 1>, scalar_prefetch = 0 : i64, scratch_operands = 1 : i64, tpu.core_type = #tpu.core_type<tc>, window_params = [{transform_indices = @transform_0, window_bounds = array<i64: 8, 16>}, {transform_indices = @transform_1, window_bounds = array<i64: 8, 1>}, {transform_indices = @transform_2, window_bounds = array<i64: 1, 1, 1>}]} {
    %c0_i32 = arith.constant 0 : i32
    %0 = arith.cmpi eq, %arg1, %c0_i32 : i32
    %1 = arith.extui %0 : i1 to i32
    %c0_i32_0 = arith.constant 0 : i32
    %2 = arith.cmpi ne, %1, %c0_i32_0 : i32
    scf.if %2 {
      %cst_11 = arith.constant 0.000000e+00 : f32
      %18 = vector.broadcast %cst_11 : f32 to vector<1x16xf32>
      %c0_12 = arith.constant 0 : index
      %c0_13 = arith.constant 0 : index
      %19 = vector.load %arg5[%c0_12, %c0_13] : memref<1x16xf32, #tpu.memory_space<vmem>>, vector<1x16xf32>
      tpu.vector_store %arg5[%c0_12, %c0_13], %18 {strides = array<i32>} : memref<1x16xf32, #tpu.memory_space<vmem>>, vector<1x16xf32>,
    } else {
    }
    %c0 = arith.constant 0 : index
    %c0_1 = arith.constant 0 : index
    %3 = vector.load %arg2[%c0, %c0_1] : memref<8x16xf32, #tpu.memory_space<vmem>>, vector<8x16xf32>
    %c0_2 = arith.constant 0 : index
    %c0_3 = arith.constant 0 : index
    %4 = vector.load %arg3[%c0_2, %c0_3] : memref<8x1xi32, #tpu.memory_space<vmem>>, vector<8x1xi32>
    %5 = tpu.iota {dimensions = array<i32: 1>} : vector<8x16xi32>
    %6 = vector.broadcast %4 : vector<8x1xi32> to vector<8x16xi32>
    %7 = arith.cmpi eq, %5, %6 : vector<8x16xi32>
    %cst = arith.constant 0.000000e+00 : f32
    %8 = vector.broadcast %cst : f32 to vector<8x16xf32>
    %9 = arith.select %7, %3, %8 : vector<8x16xi1>, vector<8x16xf32>
    %c0_4 = arith.constant 0 : index
    %c0_5 = arith.constant 0 : index
    %10 = vector.load %arg5[%c0_4, %c0_5] : memref<1x16xf32, #tpu.memory_space<vmem>>, vector<1x16xf32>
    %cst_6 = arith.constant dense<0.000000e+00> : vector<16xf32>
    %11 = vector.multi_reduction <add>, %9, %cst_6 [0] : vector<8x16xf32> to vector<16xf32>
    %12 = vector.shape_cast %11 : vector<16xf32> to vector<1x16xf32>
    %13 = arith.addf %10, %12 : vector<1x16xf32>
    %c0_7 = arith.constant 0 : index
    %c0_8 = arith.constant 0 : index
    %14 = vector.load %arg5[%c0_7, %c0_8] : memref<1x16xf32, #tpu.memory_space<vmem>>, vector<1x16xf32>
    tpu.vector_store %arg5[%c0_7, %c0_8], %13 {strides = array<i32>} : memref<1x16xf32, #tpu.memory_space<vmem>>, vector<1x16xf32>,
    %c0_i32_9 = arith.constant 0 : i32
    %15 = arith.cmpi eq, %arg1, %c0_i32_9 : i32
    %16 = arith.extui %15 : i1 to i32
    %c0_i32_10 = arith.constant 0 : i32
    %17 = arith.cmpi ne, %16, %c0_i32_10 : i32
    scf.if %17 {
      %c0_11 = arith.constant 0 : index
      %c0_12 = arith.constant 0 : index
      %18 = vector.load %arg5[%c0_11, %c0_12] : memref<1x16xf32, #tpu.memory_space<vmem>>, vector<1x16xf32>
      %19 = vector.shape_cast %18 : vector<1x16xf32> to vector<1x1x16xf32>
      %cst_13 = arith.constant dense<0.000000e+00> : vector<1xf32>
      %20 = vector.multi_reduction <add>, %19, %cst_13 [1, 2] : vector<1x1x16xf32> to vector<1xf32>
      %21 = vector.shape_cast %20 : vector<1xf32> to vector<1x1x1xf32>
      %22 = vector.extract %21[0, 0, 0] : f32 from vector<1x1x1xf32>
      %23 = vector.broadcast %22 : f32 to vector<1x1x1xf32>
      %c0_14 = arith.constant 0 : index
      %c0_15 = arith.constant 0 : index
      %c0_16 = arith.constant 0 : index
      %24 = vector.load %arg4[%c0_14, %c0_15, %c0_16] : memref<1x1x1xf32, #tpu.memory_space<vmem>>, vector<1x1x1xf32>
      tpu.vector_store %arg4[%c0_14, %c0_15, %c0_16], %23 {strides = array<i32>} : memref<1x1x1xf32, #tpu.memory_space<vmem>>, vector<1x1x1xf32>,
    } else {
    }
    return
  }
  func.func @transform_0(%arg0: i32, %arg1: i32) -> (i32, i32) {
    %c1_i32 = arith.constant 1 : i32
    %0 = arith.muli %arg0, %c1_i32 : i32
    %1 = arith.addi %0, %arg1 : i32
    %c0_i32 = arith.constant 0 : i32
    %c0_i32_0 = arith.constant 0 : i32
    return %1, %c0_i32 : i32, i32
  }
  func.func @transform_1(%arg0: i32, %arg1: i32) -> (i32, i32) {
    %c1_i32 = arith.constant 1 : i32
    %0 = arith.muli %arg0, %c1_i32 : i32
    %1 = arith.addi %0, %arg1 : i32
    %c0_i32 = arith.constant 0 : i32
    %c0_i32_0 = arith.constant 0 : i32
    return %1, %c0_i32 : i32, i32
  }
  func.func @transform_2(%arg0: i32, %arg1: i32) -> (i32, i32, i32) {
    %c0_i32 = arith.constant 0 : i32
    %c0_i32_0 = arith.constant 0 : i32
    %c0_i32_1 = arith.constant 0 : i32
    return %arg0, %c0_i32, %c0_i32_0 : i32, i32, i32
  }
}

</mosaic_0001>

<llo_original>
// kernel: tpu_custom_call.1
$region0: #{tpu_custom_call.1}
  #allocation0 [shape = 'u32[]', space=smem, size = 0x4, offset = 0x4, fixed_abs, tag = 'smem constant byte address 0x4 - core index']
  #allocation1 [shape = 'u32[144,128]{1,0:T(1,128)}', space=vmem, size = 0x12000, scoped, tag = 'internal scratch']
  #allocation2 [shape = 'f32[1,16]{1,0:T(1,128)}', space=vmem, size = 0x200, scoped, tag = 'scratch operand']
  %s0 = inlined_call_operand.vmem [shape: f32[8,16], index: 0, kind: input, shape index: {}]
  %s1 = inlined_call_operand.vmem [shape: s32[8,1], index: 1, kind: input, shape index: {}]
  %s2 = inlined_call_operand.hbm [shape: f32[1,1,1], index: 2, kind: output, shape index: {}]
  %s3 = sld [smem:[#allocation0]]
  $region26: #{tpu_custom_call.1} parent=0
    _
  %s5 = ssub.s32 1, %s3
  %s6 = scalar_select 0, %s5, %s3
  $region1: #{tpu_custom_call.1} parent=0
    #allocation3 [shape = 'u8[512]{0}', space=vmem, size = 0x400, scoped, tag = 'output window, operand 0, single buffered']
    #allocation4 [shape = 's32[1]{0}', space=sflag, size = 0x4, scoped, tag = 'scoped memory for tpu_custom_call.1']
    %7 = vsyncpa [#allocation4], 0
    // Predicated region
    $region2: #{tpu_custom_call.1} parent=1 // pred_check
      _
    $region3: #{tpu_custom_call.1} parent=1 // pred_check_branch
      %9 = sbr.rel (0) target = $region5
    $region4: #{tpu_custom_call.1} parent=1 // pred_region
      %s10 = sadd.s32 0, 0
      %p11 = scmp.lt.s32.totalorder %s10, 0
      %s12 = scalar_select %p11, %s10, 0
      %s13 = smul.addr %s12, 8
      %s14 = scalar_lea.vmem %s0, %s13
      %s15 = sadd.s32 0, 0
    $region5: #{tpu_custom_call.1} parent=1 // pred_fallthru
      _
    // Predicated region
    $region6: #{tpu_custom_call.1} parent=1 // pred_check
      _
    $region7: #{tpu_custom_call.1} parent=1 // pred_check_branch
      %17 = sbr.rel (0) target = $region9
    $region8: #{tpu_custom_call.1} parent=1 // pred_region
      %s18 = sadd.s32 0, 0
      %p19 = scmp.lt.s32.totalorder %s18, 0
      %s20 = scalar_select %p19, %s18, 0
      %s21 = smul.addr %s20, 8
      %s22 = scalar_lea.vmem %s1, %s21
      %s23 = sadd.s32 0, 0
    $region9: #{tpu_custom_call.1} parent=1 // pred_fallthru
      _
    %s24 = sadd.s32 0, 0
    %p25 = scmp.lt.s32.totalorder %s24, 0
    %s26 = scalar_select %p25, %s24, 0
    %s27 = smul.addr %s26, 8
    %s28 = scalar_lea.vmem %s0, %s27
    %s29 = sadd.s32 0, 0
    %p30 = scmp.lt.s32.totalorder %s29, 0
    %s31 = scalar_select %p30, %s29, 0
    %s32 = smul.addr %s31, 8
    %s33 = scalar_lea.vmem %s1, %s32
    %s34 = sadd.s32 0, 0
    %p35 = scmp.lt.s32.totalorder %s34, 0
    %s36 = scalar_select %p35, %s34, 0
    %s37 = smul.addr %s36, 8
    %s38 = scalar_lea.vmem %s0, %s37
    %s39 = sadd.s32 0, 0
    %s40 = sadd.s32 0, 0
    %p41 = scmp.lt.s32.totalorder %s40, 0
    %s42 = scalar_select %p41, %s40, 0
    %s43 = smul.addr %s42, 8
    %s44 = scalar_lea.vmem %s1, %s43
    %s45 = sadd.s32 0, 0
    %p46 = scmp.eq.s32.totalorder 0, 0
    // Predicated region
    $region10: #{tpu_custom_call.1} parent=1 // pred_check
      %p47 = pneg %p46
    $region11: #{tpu_custom_call.1} parent=1 // pred_check_branch
      %49 = sbr.rel (%p47) target = $region13
    $region12: #{tpu_custom_call.1} parent=1 // pred_region
      %vm50 = vcmask 122880
      %51 = vst.msk [vmem:[#allocation2] sm:$0x1] %vm50, 0.0
    $region13: #{tpu_custom_call.1} parent=1 // pred_fallthru
      _
    %v52 = vld [vmem:[%s38] sm:$0xff]
    %v53 = vld [vmem:[%s44] sm:$0xff]
    %v54 = vlaneseq
    %v55 = vand.u32 %v54, 127
    %56 = vset.pattern.permute.xlu0 0
    %57 = vperm.xlu0 %56, %v53
    %v58 = vpop.permute.xlu0 %57
    %vm59 = vcmp.eq.s32.totalorder %v55, %v58
    %v60 = vsel %vm59, %v52, 0.0
    %v61 = vld [vmem:[#allocation2] sm:$0x1]
    %vm62 = vcmask 130048
    %v63 = vsel %vm62, %v60, 0.0
    %v64 = vrot.slane %v63, 4
    %v65 = vadd.f32 %v63, %v64
    %v66 = vrot.slane %v65, 2
    %v67 = vadd.f32 %v65, %v66
    %v68 = vrot.slane %v67, 1
    %v69 = vadd.f32 %v67, %v68
    %v70 = vadd.f32 %v61, %v69
    %vm71 = vcmask 122880
    %72 = vst.msk [vmem:[#allocation2] sm:$0x1] %vm71, %v70
    // Predicated region
    $region14: #{tpu_custom_call.1} parent=1 // pred_check
      %p73 = pneg %p46
    $region15: #{tpu_custom_call.1} parent=1 // pred_check_branch
      %75 = sbr.rel (%p73) target = $region17
    $region16: #{tpu_custom_call.1} parent=1 // pred_region
      %v76 = vld [vmem:[#allocation2] sm:$0x1]
      %v77 = vsel %vm71, %v76, 0.0
      %78 = vadd.xlane.f32.xlu0 %v77
      %v79 = vpop.xlane.xlu0 %78
      %v80 = vrot.slane %v79, 4
      %v81 = vadd.f32 %v79, %v80
      %v82 = vrot.slane %v81, 2
      %v83 = vadd.f32 %v81, %v82
      %v84 = vrot.slane %v83, 1
      %v85 = vadd.f32 %v83, %v84
      %s86 = vtos %v85
      %v87 = vstv %s86
      %vm88 = vcmask 0
      %89 = vst.msk [vmem:[#allocation3] sm:$0x1] %vm88, %v87
    $region17: #{tpu_custom_call.1} parent=1 // pred_fallthru
      _
    // Predicated region
    $region18: #{tpu_custom_call.1} parent=1 // pred_check
      _
    $region19: #{tpu_custom_call.1} parent=1 // pred_check_branch
      %91 = sbr.rel (0) target = $region21
    $region20: #{tpu_custom_call.1} parent=1 // pred_region
      %s93 = ssub.s32 16, 16
      %94 = vsyncadd [#allocation4], %s93
      %s96 = sshll.u32 [#allocation3], 4
      %s97 = int_to_ptr.vmem [resolvable:$true] %s96
      %99 = dma.vmem_to_hbm [thread:$0]  %s97, 16, %s2, [#allocation4]
    $region21: #{tpu_custom_call.1} parent=1 // pred_fallthru
      _
    // Predicated region
    $region22: #{tpu_custom_call.1} parent=1 // pred_check
      _
    $region23: #{tpu_custom_call.1} parent=1 // pred_check_branch
      %101 = sbr.rel (0) target = $region25
    $region24: #{tpu_custom_call.1} parent=1 // pred_region
      %102 = dma.done [#allocation4], 16
    $region25: #{tpu_custom_call.1} parent=1 // pred_fallthru
      _
    %103 = vsyncpa [#allocation4], 1

</llo_original>
